<compile_context>
chip_gen: v5e
topology: v5e:2x2
jax: 0.10.0
libtpu: 0.0.40
codegen_flags: <defaults>
</compile_context>

<pallas_src>
import jax
import jax.numpy as jnp
from jax.experimental import pallas as pl
from jax.experimental.pallas import tpu as pltpu

OUT_PAD = 128  # fused head output width (lane-dense); cols = [logits | aux | zeros]


def aes_kernel(emb_ref, mask_ref,          # per-tile activations
               wenc_ref, benc_ref,         # stand-in encoder params
               whead_ref, bhead_ref,       # fused (head ++ aux_head) params
               out_ref,                    # [b_blk, 1, OUT_PAD] fused logits
               summed_acc, denom_acc):     # VMEM accumulators
    """Encoder projection -> masked-mean accumulation -> fused head matmul."""
    s_idx = pl.program_id(1)

    @pl.when(s_idx == 0)
    def _init():
        summed_acc[...] = jnp.zeros_like(summed_acc)
        denom_acc[...] = jnp.zeros_like(denom_acc)

    b_blk, s_blk, hdim = emb_ref.shape

    # ---- stand-in backbone projection: bf16 operands, f32 MXU accumulation ----
    x2 = emb_ref[...].reshape(b_blk * s_blk, hdim)             # tile-aligned collapse
    h2 = jnp.tanh(
        jnp.dot(x2, wenc_ref[...], preferred_element_type=jnp.float32)
        + benc_ref[...]                                        # f32 bias, f32 tanh
    )                                                          # [b*s, H] f32
    h3 = h2.reshape(b_blk, s_blk, hdim)                        # [b, s, H]

    # ---- MeanPooling: accumulate mask-weighted sum + token count per S tile ----
    m = mask_ref[...]                                          # [b, s, 1] f32
    summed_acc[...] += jnp.sum(h3 * m, axis=1)                 # [b, H]
    denom_acc[...] += jnp.sum(m, axis=1)                       # [b, 1]

    # ---- finalize: divide + single fused lane-dense head matmul ----
    @pl.when(s_idx == pl.num_programs(1) - 1)
    def _finalize():
        denom = jnp.maximum(denom_acc[...], 1e-9)              # clamp like torch
        feature = summed_acc[...] * pl.reciprocal(denom, approx=True)   # [b, H]
        fused = (
            jnp.dot(feature, whead_ref[...], preferred_element_type=jnp.float32)
            + bhead_ref[...]
        )                                                      # [b, OUT_PAD]
        out_ref[...] = fused.reshape(out_ref.shape)


def aes_forward(emb, mask, params, *, b_blk=1, s_blk=None):
    """Returns (logits [B,1], aux_logits [B,T]) via the fused Pallas kernel."""
    B, S, H = emb.shape
    T = params["wa"].shape[1]
    if s_blk is None:
        s_blk = S
    assert H % 128 == 0, "hidden dim must be lane-aligned (multiple of 128)"
    assert B % b_blk == 0 and S % s_blk == 0 and s_blk % 16 == 0
    assert 1 + T <= OUT_PAD

    # bf16 operands for the dominant matmul (halves HBM/VMEM traffic).
    emb_bf16 = emb.astype(jnp.bfloat16)
    wenc = params["wenc"].astype(jnp.bfloat16)
    benc = params["benc"].astype(jnp.float32).reshape(1, H)
    mask3 = mask.astype(jnp.float32)[:, :, None]               # [B, S, 1]

    # Fuse head (H->1) and aux_head (H->T) into one lane-dense [H, 128] weight.
    whead = jnp.zeros((H, OUT_PAD), jnp.float32)
    whead = whead.at[:, 0:1].set(params["wh"]).at[:, 1:1 + T].set(params["wa"])
    bhead = jnp.zeros((1, OUT_PAD), jnp.float32)
    bhead = bhead.at[:, 0:1].set(params["bh"].reshape(1, 1))
    bhead = bhead.at[:, 1:1 + T].set(params["ba"].reshape(1, T))

    grid = (B // b_blk, S // s_blk)

    fused = pl.pallas_call(
        aes_kernel,
        out_shape=jax.ShapeDtypeStruct((B, 1, OUT_PAD), jnp.float32),
        grid_spec=pltpu.PrefetchScalarGridSpec(
            num_scalar_prefetch=0,
            grid=grid,
            in_specs=[
                pl.BlockSpec((b_blk, s_blk, H), lambda b, s: (b, s, 0)),   # emb
                pl.BlockSpec((b_blk, s_blk, 1), lambda b, s: (b, s, 0)),   # mask
                pl.BlockSpec((H, H), lambda b, s: (0, 0)),                 # wenc
                pl.BlockSpec((1, H), lambda b, s: (0, 0)),                 # benc
                pl.BlockSpec((H, OUT_PAD), lambda b, s: (0, 0)),           # whead
                pl.BlockSpec((1, OUT_PAD), lambda b, s: (0, 0)),           # bhead
            ],
            out_specs=pl.BlockSpec((b_blk, 1, OUT_PAD), lambda b, s: (b, 0, 0)),
            scratch_shapes=[
                pltpu.VMEM((b_blk, H), jnp.float32),   # masked-sum accumulator
                pltpu.VMEM((b_blk, 1), jnp.float32),   # token-count accumulator
            ],
        ),
        compiler_params=pltpu.CompilerParams(
            dimension_semantics=("parallel", "arbitrary"),
            vmem_limit_bytes=32 * 1024 * 1024,
        ),
    )(emb_bf16, mask3, wenc, benc, whead, bhead)

    logits = fused[:, 0, 0:1]          # [B, 1]
    aux_logits = fused[:, 0, 1:1 + T]  # [B, T]
    return logits, aux_logits


def reference_forward(emb, mask, params):
    """Pure-JAX f32 reference for correctness checking."""
    h = jnp.tanh(emb @ params["wenc"] + params["benc"][0])
    m3 = mask[:, :, None]
    feature = jnp.sum(h * m3, axis=1) / jnp.maximum(
        jnp.sum(mask, axis=1, keepdims=True), 1e-9)
    logits = feature @ params["wh"] + params["bh"][0]
    aux = feature @ params["wa"] + params["ba"][0]
    return logits, aux


if __name__ == "__main__":
    # Small, lane-aligned shapes consistent with the module's forward.
    B, S, H, T, V = 2, 32, 128, 3, 256   # batch, seq, hidden, aux tasks, vocab

    key = jax.random.PRNGKey(0)
    k_emb, k_ids, k_enc, k_be, k_h, k_bh, k_a, k_ba = jax.random.split(key, 8)

    embedding_table = jax.random.normal(k_emb, (V, H), jnp.float32) * 0.1
    input_ids = jax.random.randint(k_ids, (B, S), 0, V)
    lengths = jnp.array([23, 11], dtype=jnp.int32)
    attention_mask = (jnp.arange(S)[None, :] < lengths[:, None]).astype(jnp.float32)

    params = {
        "wenc": jax.random.normal(k_enc, (H, H), jnp.float32) * 0.05,
        "benc": jax.random.normal(k_be, (1, H), jnp.float32) * 0.05,
        "wh":   jax.random.normal(k_h, (H, 1), jnp.float32) * 0.1,
        "bh":   jax.random.normal(k_bh, (1, 1), jnp.float32) * 0.1,
        "wa":   jax.random.normal(k_a, (H, T), jnp.float32) * 0.1,
        "ba":   jax.random.normal(k_ba, (1, T), jnp.float32) * 0.1,
    }

    # Glue: embedding lookup (gather) stays in plain JAX.
    # TODO(synk): could be fused via PrefetchScalarGridSpec + pl.Element row-gather.
    emb = embedding_table[input_ids]                           # [B, S, H] f32

    logits, aux_logits = aes_forward(emb, attention_mask, params, b_blk=1, s_blk=16)
    jax.block_until_ready((logits, aux_logits))

    ref_logits, ref_aux = reference_forward(emb, attention_mask, params)
    assert logits.shape == (B, 1) and aux_logits.shape == (B, T)
    # bf16 MXU operands + approx reciprocal -> slightly looser tolerance than f32.
    assert jnp.allclose(logits, ref_logits, atol=2e-2, rtol=2e-2)
    assert jnp.allclose(aux_logits, ref_aux, atol=2e-2, rtol=2e-2)

    print("KERNEL_OK")
</pallas_src>

<mosaic_0001>
module attributes {stable_mosaic.version = 11 : i64} {
  func.func @aes_kernel(%arg0: i32, %arg1: i32, %arg2: memref<1x16x128xbf16, #tpu.memory_space<vmem>>, %arg3: memref<1x16x1xf32, #tpu.memory_space<vmem>>, %arg4: memref<128x128xbf16, #tpu.memory_space<vmem>>, %arg5: memref<1x128xf32, #tpu.memory_space<vmem>>, %arg6: memref<128x128xf32, #tpu.memory_space<vmem>>, %arg7: memref<1x128xf32, #tpu.memory_space<vmem>>, %arg8: memref<1x1x128xf32, #tpu.memory_space<vmem>>, %arg9: memref<1x128xf32, #tpu.memory_space<vmem>>, %arg10: memref<1x1xf32, #tpu.memory_space<vmem>>) attributes {dimension_semantics = [#tpu.dimension_semantics<parallel>, #tpu.dimension_semantics<arbitrary>], iteration_bounds = array<i64: 2, 2>, scalar_prefetch = 0 : i64, scratch_operands = 2 : i64, tpu.core_type = #tpu.core_type<tc>, window_params = [{transform_indices = @transform_0, window_bounds = array<i64: 1, 16, 128>}, {transform_indices = @transform_1, window_bounds = array<i64: 1, 16, 1>}, {pipeline_mode = #tpu.pipeline_mode<synchronous>, transform_indices = @transform_2, window_bounds = array<i64: 128, 128>}, {pipeline_mode = #tpu.pipeline_mode<synchronous>, transform_indices = @transform_3, window_bounds = array<i64: 1, 128>}, {pipeline_mode = #tpu.pipeline_mode<synchronous>, transform_indices = @transform_4, window_bounds = array<i64: 128, 128>}, {pipeline_mode = #tpu.pipeline_mode<synchronous>, transform_indices = @transform_5, window_bounds = array<i64: 1, 128>}, {transform_indices = @transform_6, window_bounds = array<i64: 1, 1, 128>}]} {
    %c0_i32 = arith.constant 0 : i32
    %0 = arith.cmpi eq, %arg1, %c0_i32 : i32
    %1 = arith.extui %0 : i1 to i32
    %c0_i32_0 = arith.constant 0 : i32
    %2 = arith.cmpi ne, %1, %c0_i32_0 : i32
    scf.if %2 {
      %cst_21 = arith.constant 0.000000e+00 : f32
      %26 = vector.broadcast %cst_21 : f32 to vector<1x128xf32>
      %c0_22 = arith.constant 0 : index
      %c0_23 = arith.constant 0 : index
      %27 = vector.load %arg9[%c0_22, %c0_23] : memref<1x128xf32, #tpu.memory_space<vmem>>, vector<1x128xf32>
      tpu.vector_store %arg9[%c0_22, %c0_23], %26 {strides = array<i32>} : memref<1x128xf32, #tpu.memory_space<vmem>>, vector<1x128xf32>,
      %cst_24 = arith.constant 0.000000e+00 : f32
      %28 = vector.broadcast %cst_24 : f32 to vector<1x1xf32>
      %c0_25 = arith.constant 0 : index
      %c0_26 = arith.constant 0 : index
      %29 = vector.load %arg10[%c0_25, %c0_26] : memref<1x1xf32, #tpu.memory_space<vmem>>, vector<1x1xf32>
      tpu.vector_store %arg10[%c0_25, %c0_26], %28 {strides = array<i32>} : memref<1x1xf32, #tpu.memory_space<vmem>>, vector<1x1xf32>,
    } else {
    }
    %c0 = arith.constant 0 : index
    %c0_1 = arith.constant 0 : index
    %c0_2 = arith.constant 0 : index
    %3 = vector.load %arg2[%c0, %c0_1, %c0_2] : memref<1x16x128xbf16, #tpu.memory_space<vmem>>, vector<1x16x128xbf16>
    %4 = vector.shape_cast %3 : vector<1x16x128xbf16> to vector<16x128xbf16>
    %c0_3 = arith.constant 0 : index
    %c0_4 = arith.constant 0 : index
    %5 = vector.load %arg4[%c0_3, %c0_4] : memref<128x128xbf16, #tpu.memory_space<vmem>>, vector<128x128xbf16>
    %cst = arith.constant dense<0.000000e+00> : vector<16x128xf32>
    %6 = tpu.matmul %4, %5, %cst {dimension_numbers = #tpu.dot_dimension_numbers<[1], [0], [0], [1], [0, 0, 1, 1], [], []>} : vector<16x128xbf16>, vector<128x128xbf16>, vector<16x128xf32> -> vector<16x128xf32>
    %c0_5 = arith.constant 0 : index
    %c0_6 = arith.constant 0 : index
    %7 = vector.load %arg5[%c0_5, %c0_6] : memref<1x128xf32, #tpu.memory_space<vmem>>, vector<1x128xf32>
    %8 = vector.broadcast %7 : vector<1x128xf32> to vector<16x128xf32>
    %9 = arith.addf %6, %8 : vector<16x128xf32>
    %10 = math.tanh %9 : vector<16x128xf32>
    %11 = vector.shape_cast %10 : vector<16x128xf32> to vector<1x16x128xf32>
    %c0_7 = arith.constant 0 : index
    %c0_8 = arith.constant 0 : index
    %c0_9 = arith.constant 0 : index
    %12 = vector.load %arg3[%c0_7, %c0_8, %c0_9] : memref<1x16x1xf32, #tpu.memory_space<vmem>>, vector<1x16x1xf32>
    %c0_10 = arith.constant 0 : index
    %c0_11 = arith.constant 0 : index
    %13 = vector.load %arg9[%c0_10, %c0_11] : memref<1x128xf32, #tpu.memory_space<vmem>>, vector<1x128xf32>
    %14 = vector.broadcast %12 : vector<1x16x1xf32> to vector<1x16x128xf32>
    %15 = arith.mulf %11, %14 : vector<1x16x128xf32>
    %cst_12 = arith.constant dense<0.000000e+00> : vector<1x128xf32>
    %16 = vector.multi_reduction <add>, %15, %cst_12 [1] : vector<1x16x128xf32> to vector<1x128xf32>
    %17 = arith.addf %13, %16 : vector<1x128xf32>
    %c0_13 = arith.constant 0 : index
    %c0_14 = arith.constant 0 : index
    %18 = vector.load %arg9[%c0_13, %c0_14] : memref<1x128xf32, #tpu.memory_space<vmem>>, vector<1x128xf32>
    tpu.vector_store %arg9[%c0_13, %c0_14], %17 {strides = array<i32>} : memref<1x128xf32, #tpu.memory_space<vmem>>, vector<1x128xf32>,
    %c0_15 = arith.constant 0 : index
    %c0_16 = arith.constant 0 : index
    %19 = vector.load %arg10[%c0_15, %c0_16] : memref<1x1xf32, #tpu.memory_space<vmem>>, vector<1x1xf32>
    %cst_17 = arith.constant dense<0.000000e+00> : vector<1x1xf32>
    %20 = vector.multi_reduction <add>, %12, %cst_17 [1] : vector<1x16x1xf32> to vector<1x1xf32>
    %21 = arith.addf %19, %20 : vector<1x1xf32>
    %c0_18 = arith.constant 0 : index
    %c0_19 = arith.constant 0 : index
    %22 = vector.load %arg10[%c0_18, %c0_19] : memref<1x1xf32, #tpu.memory_space<vmem>>, vector<1x1xf32>
    tpu.vector_store %arg10[%c0_18, %c0_19], %21 {strides = array<i32>} : memref<1x1xf32, #tpu.memory_space<vmem>>, vector<1x1xf32>,
    %c1_i32 = arith.constant 1 : i32
    %23 = arith.cmpi eq, %arg1, %c1_i32 : i32
    %24 = arith.extui %23 : i1 to i32
    %c0_i32_20 = arith.constant 0 : i32
    %25 = arith.cmpi ne, %24, %c0_i32_20 : i32
    scf.if %25 {
      %c0_21 = arith.constant 0 : index
      %c0_22 = arith.constant 0 : index
      %26 = vector.load %arg10[%c0_21, %c0_22] : memref<1x1xf32, #tpu.memory_space<vmem>>, vector<1x1xf32>
      %cst_23 = arith.constant 9.99999971E-10 : f32
      %27 = vector.broadcast %cst_23 : f32 to vector<1x1xf32>
      %28 = arith.maximumf %26, %27 : vector<1x1xf32>
      %c0_24 = arith.constant 0 : index
      %c0_25 = arith.constant 0 : index
      %29 = vector.load %arg9[%c0_24, %c0_25] : memref<1x128xf32, #tpu.memory_space<vmem>>, vector<1x128xf32>
      %30 = tpu.reciprocal %28 {approx = true} : vector<1x1xf32> -> vector<1x1xf32>
      %31 = vector.broadcast %30 : vector<1x1xf32> to vector<1x128xf32>
      %32 = arith.mulf %29, %31 : vector<1x128xf32>
      %c0_26 = arith.constant 0 : index
      %c0_27 = arith.constant 0 : index
      %33 = vector.load %arg6[%c0_26, %c0_27] : memref<128x128xf32, #tpu.memory_space<vmem>>, vector<128x128xf32>
      %cst_28 = arith.constant dense<0.000000e+00> : vector<1x128xf32>
      %34 = tpu.matmul %32, %33, %cst_28 {dimension_numbers = #tpu.dot_dimension_numbers<[1], [0], [0], [1], [0, 0, 1, 1], [], []>} : vector<1x128xf32>, vector<128x128xf32>, vector<1x128xf32> -> vector<1x128xf32>
      %c0_29 = arith.constant 0 : index
      %c0_30 = arith.constant 0 : index
      %35 = vector.load %arg7[%c0_29, %c0_30] : memref<1x128xf32, #tpu.memory_space<vmem>>, vector<1x128xf32>
      %36 = arith.addf %34, %35 : vector<1x128xf32>
      %37 = vector.shape_cast %36 : vector<1x128xf32> to vector<1x1x128xf32>
      %c0_31 = arith.constant 0 : index
      %c0_32 = arith.constant 0 : index
      %c0_33 = arith.constant 0 : index
      %38 = vector.load %arg8[%c0_31, %c0_32, %c0_33] : memref<1x1x128xf32, #tpu.memory_space<vmem>>, vector<1x1x128xf32>
      tpu.vector_store %arg8[%c0_31, %c0_32, %c0_33], %37 {strides = array<i32>} : memref<1x1x128xf32, #tpu.memory_space<vmem>>, vector<1x1x128xf32>,
    } else {
    }
    return
  }
  func.func @transform_0(%arg0: i32, %arg1: i32) -> (i32, i32, i32) {
    %c0_i32 = arith.constant 0 : i32
    %c0_i32_0 = arith.constant 0 : i32
    return %arg0, %arg1, %c0_i32 : i32, i32, i32
  }
  func.func @transform_1(%arg0: i32, %arg1: i32) -> (i32, i32, i32) {
    %c0_i32 = arith.constant 0 : i32
    %c0_i32_0 = arith.constant 0 : i32
    return %arg0, %arg1, %c0_i32 : i32, i32, i32
  }
  func.func @transform_2(%arg0: i32, %arg1: i32) -> (i32, i32) {
    %c0_i32 = arith.constant 0 : i32
    %c0_i32_0 = arith.constant 0 : i32
    %c0_i32_1 = arith.constant 0 : i32
    return %c0_i32, %c0_i32_0 : i32, i32
  }
  func.func @transform_3(%arg0: i32, %arg1: i32) -> (i32, i32) {
    %c0_i32 = arith.constant 0 : i32
    %c0_i32_0 = arith.constant 0 : i32
    %c0_i32_1 = arith.constant 0 : i32
    return %c0_i32, %c0_i32_0 : i32, i32
  }
  func.func @transform_4(%arg0: i32, %arg1: i32) -> (i32, i32) {
    %c0_i32 = arith.constant 0 : i32
    %c0_i32_0 = arith.constant 0 : i32
    %c0_i32_1 = arith.constant 0 : i32
    return %c0_i32, %c0_i32_0 : i32, i32
  }
  func.func @transform_5(%arg0: i32, %arg1: i32) -> (i32, i32) {
    %c0_i32 = arith.constant 0 : i32
    %c0_i32_0 = arith.constant 0 : i32
    %c0_i32_1 = arith.constant 0 : i32
    return %c0_i32, %c0_i32_0 : i32, i32
  }
  func.func @transform_6(%arg0: i32, %arg1: i32) -> (i32, i32, i32) {
    %c0_i32 = arith.constant 0 : i32
    %c0_i32_0 = arith.constant 0 : i32
    %c0_i32_1 = arith.constant 0 : i32
    return %arg0, %c0_i32, %c0_i32_0 : i32, i32, i32
  }
}

</mosaic_0001>

<llo_original>
// kernel: tpu_custom_call.1
$region0: #{tpu_custom_call.1}
  #allocation0 [shape = 'u32[]', space=smem, size = 0x4, offset = 0x4, fixed_abs, tag = 'smem constant byte address 0x4 - core index']
  #allocation1 [shape = 'u32[72,128]{1,0:T(1,128)}', space=vmem, size = 0x9000, scoped, tag = 'internal scratch']
  #allocation2 [shape = 'f32[1,128]{1,0:T(1,128)}', space=vmem, size = 0x200, scoped, tag = 'scratch operand']
  #allocation3 [shape = 'f32[1,1]{1,0:T(1,128)}', space=vmem, size = 0x200, scoped, tag = 'scratch operand']
  %s0 = inlined_call_operand.hbm [shape: bf16[2,32,128], index: 0, kind: input, shape index: {}]
  %s1 = inlined_call_operand.vmem [shape: f32[2,32,1], index: 1, kind: input, shape index: {}]
  %s2 = inlined_call_operand.vmem [shape: bf16[128,128], index: 2, kind: input, shape index: {}]
  %s3 = inlined_call_operand.vmem [shape: f32[1,128], index: 3, kind: input, shape index: {}]
  %s4 = inlined_call_operand.hbm [shape: f32[128,128], index: 4, kind: input, shape index: {}]
  %s5 = inlined_call_operand.vmem [shape: f32[1,128], index: 5, kind: input, shape index: {}]
  %s6 = inlined_call_operand.hbm [shape: f32[2,1,128], index: 6, kind: output, shape index: {}]
  %s7 = sld [smem:[#allocation0]]
  $region73: #{tpu_custom_call.1} parent=0
    _
  %s9 = ssub.s32 1, %s7
  %s10 = scalar_select 0, %s9, %s7
  $region1: #{tpu_custom_call.1} parent=0
    #allocation4 [shape = 'u8[8192]{0}', space=vmem, size = 0x2000, scoped, tag = 'input window, operand 0']
    #allocation5 [shape = 's32[2]{0}', space=sflag, size = 0x8, scoped, tag = 'scoped memory for tpu_custom_call.1']
    #allocation6 [shape = 's32[2]{0}', space=sflag, size = 0x8, scoped, tag = 'scoped memory for tpu_custom_call.1']
    #allocation7 [shape = 'u8[65536]{0}', space=vmem, size = 0x10000, scoped, tag = 'input window, operand 4, single buffered']
    #allocation8 [shape = 's32[1]{0}', space=sflag, size = 0x4, scoped, tag = 'scoped memory for tpu_custom_call.1']
    #allocation9 [shape = 'u8[1024]{0}', space=vmem, size = 0x400, scoped, tag = 'output window, operand 0']
    %11 = vsyncpa [#allocation5], 0
    %s12 = scalar_lea.sflag [#allocation5], 1
    %13 = vsyncpa %s12, 0
    %14 = vsyncpa [#allocation8], 0
    %15 = vsyncpa [#allocation6], 0
    %s16 = scalar_lea.sflag [#allocation6], 1
    %17 = vsyncpa %s16, 0
    loop: start=0, step=1, limit=6
    $region2: #{tpu_custom_call.1} parent=1 // loop_pre_header
      _
    $region3: #{tpu_custom_call.1} parent=1 // loop_header
      %s19 = sphi 0, %s23
      %p20 = scmp.ge.s32.totalorder %s19, 6
      %s26 = sphi 0, %s38
      %s27 = sphi 0, %s34
      %s28 = sphi 0, %s26
      %s29 = sphi 0, %s27
      %s30 = sphi 0, %s28
      %s31 = sphi 0, %s29
      %s43 = sphi 0, %s45
      %s46 = sphi 0, %s43
      %s47 = sphi 0, %s46
      %s63 = sphi 0, %s47
      %s71 = sphi 0, %s73
      %s74 = sphi 0, %s71
      %s75 = sphi 0, %s74
      %s91 = sphi 0, %s75
      %s95 = sphi 0, %s95
      %s97 = sphi 0, %s95
      %s98 = sphi 0, %s97
      %s112 = sphi 0, %s98
      %s116 = sphi 0, %s116
      %s118 = sphi 0, %s116
      %s119 = sphi 0, %s118
      %s133 = sphi 0, %s119
      %s137 = sphi 0, %s137
      %s139 = sphi 0, %s137
      %s140 = sphi 0, %s139
      %s154 = sphi 0, %s140
      %s158 = sphi 0, %s158
      %s160 = sphi 0, %s158
      %s161 = sphi 0, %s160
      %s175 = sphi 0, %s161
      %s181 = sphi 0, %s183
      %s184 = sphi 0, %s181
      %s185 = sphi 0, %s184
      %s201 = sphi 0, %s185
    $region4: #{tpu_custom_call.1} parent=1 // loop_header_branch
      %22 = sbr.rel (%p20) target = $region8
    $region5: #{tpu_custom_call.1} parent=1 // loop_body
      %s24 = ssub.s32 %s19, 1
      %s25 = ssub.s32 %s19, 2
      %s32 = sadd.s32 1, %s27
      %p33 = scmp.ge.s32.totalorder %s32, 2
      %s34 = scalar_select %p33, 0, %s32
      %s35 = sadd.s32 1, %s26
      %s36 = scalar_select %p33, %s35, %s26
      %p37 = scmp.ge.s32.totalorder %s36, 2
      %s38 = scalar_select %p37, 0, %s36
      %s39 = ssub.s32 %s26, %s38
      %s40 = ssub.s32 %s27, %s34
      %s41 = sor.u32 %s39, %s40
      %p42 = scmp.eq.s32.totalorder %s41, 0
      %s44 = sadd.s32 %s43, 1
      %s45 = scalar_select %p42, %s43, %s44
      %p48 = pneg %p42
      %p49 = scmp.eq.s32.totalorder %s19, 3
      %p50 = por %p48, %p49
      %p51 = scmp.ne.s32.totalorder %s43, %s46
      %p52 = scmp.eq.s32.totalorder %s19, 0
      %p53 = por %p51, %p52
      %p54 = scmp.ne.s32.totalorder %s43, %s46
      %p55 = scmp.eq.s32.totalorder %s24, 3
      %p56 = por %p54, %p55
      %p57 = scmp.ne.s32.totalorder %s46, %s47
      %p58 = scmp.eq.s32.totalorder %s24, 0
      %p59 = por %p57, %p58
      %p60 = scmp.ne.s32.totalorder %s46, %s47
      %p61 = scmp.eq.s32.totalorder %s25, 3
      %p62 = por %p60, %p61
      %p64 = scmp.ne.s32.totalorder %s47, %s63
      %p65 = scmp.eq.s32.totalorder %s25, 0
      %p66 = por %p64, %p65
      %s67 = ssub.s32 %s26, %s38
      %s68 = ssub.s32 %s27, %s34
      %s69 = sor.u32 %s67, %s68
      %p70 = scmp.eq.s32.totalorder %s69, 0
      %s72 = sadd.s32 %s71, 1
      %s73 = scalar_select %p70, %s71, %s72
      %p76 = pneg %p70
      %p77 = scmp.eq.s32.totalorder %s19, 3
      %p78 = por %p76, %p77
      %p79 = scmp.ne.s32.totalorder %s71, %s74
      %p80 = scmp.eq.s32.totalorder %s19, 0
      %p81 = por %p79, %p80
      %p82 = scmp.ne.s32.totalorder %s71, %s74
      %p83 = scmp.eq.s32.totalorder %s24, 3
      %p84 = por %p82, %p83
      %p85 = scmp.ne.s32.totalorder %s74, %s75
      %p86 = scmp.eq.s32.totalorder %s24, 0
      %p87 = por %p85, %p86
      %p88 = scmp.ne.s32.totalorder %s74, %s75
      %p89 = scmp.eq.s32.totalorder %s25, 3
      %p90 = por %p88, %p89
      %p92 = scmp.ne.s32.totalorder %s75, %s91
      %p93 = scmp.eq.s32.totalorder %s25, 0
      %p94 = por %p92, %p93
      %s96 = sadd.s32 %s95, 1
      %p99 = scmp.eq.s32.totalorder %s19, 3
      %p100 = scmp.ne.s32.totalorder %s95, %s97
      %p101 = scmp.eq.s32.totalorder %s19, 0
      %p102 = por %p100, %p101
      %p103 = scmp.ne.s32.totalorder %s95, %s97
      %p104 = scmp.eq.s32.totalorder %s24, 3
      %p105 = por %p103, %p104
      %p106 = scmp.ne.s32.totalorder %s97, %s98
      %p107 = scmp.eq.s32.totalorder %s24, 0
      %p108 = por %p106, %p107
      %p109 = scmp.ne.s32.totalorder %s97, %s98
      %p110 = scmp.eq.s32.totalorder %s25, 3
      %p111 = por %p109, %p110
      %p113 = scmp.ne.s32.totalorder %s98, %s112
      %p114 = scmp.eq.s32.totalorder %s25, 0
      %p115 = por %p113, %p114
      %s117 = sadd.s32 %s116, 1
      %p120 = scmp.eq.s32.totalorder %s19, 3
      %p121 = scmp.ne.s32.totalorder %s116, %s118
      %p122 = scmp.eq.s32.totalorder %s19, 0
      %p123 = por %p121, %p122
      %p124 = scmp.ne.s32.totalorder %s116, %s118
      %p125 = scmp.eq.s32.totalorder %s24, 3
      %p126 = por %p124, %p125
      %p127 = scmp.ne.s32.totalorder %s118, %s119
      %p128 = scmp.eq.s32.totalorder %s24, 0
      %p129 = por %p127, %p128
      %p130 = scmp.ne.s32.totalorder %s118, %s119
      %p131 = scmp.eq.s32.totalorder %s25, 3
      %p132 = por %p130, %p131
      %p134 = scmp.ne.s32.totalorder %s119, %s133
      %p135 = scmp.eq.s32.totalorder %s25, 0
      %p136 = por %p134, %p135
      %s138 = sadd.s32 %s137, 1
      %p141 = scmp.eq.s32.totalorder %s19, 3
      %p142 = scmp.ne.s32.totalorder %s137, %s139
      %p143 = scmp.eq.s32.totalorder %s19, 0
      %p144 = por %p142, %p143
      %p145 = scmp.ne.s32.totalorder %s137, %s139
      %p146 = scmp.eq.s32.totalorder %s24, 3
      %p147 = por %p145, %p146
      %p148 = scmp.ne.s32.totalorder %s139, %s140
      %p149 = scmp.eq.s32.totalorder %s24, 0
      %p150 = por %p148, %p149
      %p151 = scmp.ne.s32.totalorder %s139, %s140
      %p152 = scmp.eq.s32.totalorder %s25, 3
      %p153 = por %p151, %p152
      %p155 = scmp.ne.s32.totalorder %s140, %s154
      %p156 = scmp.eq.s32.totalorder %s25, 0
      %p157 = por %p155, %p156
      %s159 = sadd.s32 %s158, 1
      %p162 = scmp.eq.s32.totalorder %s19, 3
      %p163 = scmp.ne.s32.totalorder %s158, %s160
      %p164 = scmp.eq.s32.totalorder %s19, 0
      %p165 = por %p163, %p164
      %p166 = scmp.ne.s32.totalorder %s158, %s160
      %p167 = scmp.eq.s32.totalorder %s24, 3
      %p168 = por %p166, %p167
      %p169 = scmp.ne.s32.totalorder %s160, %s161
      %p170 = scmp.eq.s32.totalorder %s24, 0
      %p171 = por %p169, %p170
      %p172 = scmp.ne.s32.totalorder %s160, %s161
      %p173 = scmp.eq.s32.totalorder %s25, 3
      %p174 = por %p172, %p173
      %p176 = scmp.ne.s32.totalorder %s161, %s175
      %p177 = scmp.eq.s32.totalorder %s25, 0
      %p178 = por %p176, %p177
      %s179 = ssub.s32 %s26, %s38
      %p180 = scmp.eq.s32.totalorder %s179, 0
      %s182 = sadd.s32 %s181, 1
      %s183 = scalar_select %p180, %s181, %s182
      %p186 = pneg %p180
      %p187 = scmp.eq.s32.totalorder %s19, 3
      %p188 = por %p186, %p187
      %p189 = scmp.ne.s32.totalorder %s181, %s184
      %p190 = scmp.eq.s32.totalorder %s19, 0
      %p191 = por %p189, %p190
      %p192 = scmp.ne.s32.totalorder %s181, %s184
      %p193 = scmp.eq.s32.totalorder %s24, 3
      %p194 = por %p192, %p193
      %p195 = scmp.ne.s32.totalorder %s184, %s185
      %p196 = scmp.eq.s32.totalorder %s24, 0
      %p197 = por %p195, %p196
      %p198 = scmp.ne.s32.totalorder %s184, %s185
      %p199 = scmp.eq.s32.totalorder %s25, 3
      %p200 = por %p198, %p199
      %p202 = scmp.ne.s32.totalorder %s185, %s201
      %p203 = scmp.eq.s32.totalorder %s25, 0
      %p204 = por %p202, %p203
      %p205 = scmp.le.s32.totalorder 1, %s19
      %p206 = scmp.lt.s32.totalorder %s19, 5
      %p207 = pnand %p205, %p206
      %p208 = pneg %p207
      // Predicated region
      $region9: #{tpu_custom_call.1} parent=5 // pred_check
        _
      $region10: #{tpu_custom_call.1} parent=5 // pred_check_branch
        %210 = sbr.rel (%p207) target = $region12
      $region11: #{tpu_custom_call.1} parent=5 // pred_region
        %s211 = ssub.s32 %s19, 1
        // Predicated region
        $region13: #{tpu_custom_call.1} parent=11 // pred_check
          %p212 = pneg %p108
        $region14: #{tpu_custom_call.1} parent=11 // pred_check_branch
          %214 = sbr.rel (%p212) target = $region16
        $region15: #{tpu_custom_call.1} parent=11 // pred_region
          _
        $region16: #{tpu_custom_call.1} parent=11 // pred_fallthru
          _
        // Predicated region
        $region17: #{tpu_custom_call.1} parent=11 // pred_check
          %p215 = pneg %p129
        $region18: #{tpu_custom_call.1} parent=11 // pred_check_branch
          %217 = sbr.rel (%p215) target = $region20
        $region19: #{tpu_custom_call.1} parent=11 // pred_region
          _
        $region20: #{tpu_custom_call.1} parent=11 // pred_fallthru
          _
        // Predicated region
        $region21: #{tpu_custom_call.1} parent=11 // pred_check
          %p218 = pneg %p150
        $region22: #{tpu_custom_call.1} parent=11 // pred_check_branch
          %220 = sbr.rel (%p218) target = $region24
        $region23: #{tpu_custom_call.1} parent=11 // pred_region
          %222 = vsyncadd [#allocation8], 0
          %s223 = sshll.u32 %s4, 4
          %s224 = int_to_ptr.hbm [resolvable:$true] %s223
          %s225 = sshll.u32 [#allocation7], 4
          %s226 = int_to_ptr.vmem [resolvable:$true] %s225
          %231 = dma.hbm_to_vmem [thread:$0]  %s224, 2048, %s226, [#allocation8], 128, 128, 8
        $region24: #{tpu_custom_call.1} parent=11 // pred_fallthru
          _
        // Predicated region
        $region25: #{tpu_custom_call.1} parent=11 // pred_check
          %p232 = pneg %p171
        $region26: #{tpu_custom_call.1} parent=11 // pred_check_branch
          %234 = sbr.rel (%p232) target = $region28
        $region27: #{tpu_custom_call.1} parent=11 // pred_region
          _
        $region28: #{tpu_custom_call.1} parent=11 // pred_fallthru
          _
      $region12: #{tpu_custom_call.1} parent=5 // pred_fallthru
        _
      %p235 = scmp.lt.s32.totalorder %s19, 4
      // Predicated region
      $region29: #{tpu_custom_call.1} parent=5 // pred_check
        %p236 = pneg %p235
      $region30: #{tpu_custom_call.1} parent=5 // pred_check_branch
        %238 = sbr.rel (%p236) target = $region32
      $region31: #{tpu_custom_call.1} parent=5 // pred_region
        // Predicated region
        $region33: #{tpu_custom_call.1} parent=31 // pred_check
          %p239 = pneg %p53
        $region34: #{tpu_custom_call.1} parent=31 // pred_check_branch
          %241 = sbr.rel (%p239) target = $region36
        $region35: #{tpu_custom_call.1} parent=31 // pred_region
          %s242 = sand.u32 %s43, 1
          %s243 = scalar_lea.sflag [#allocation5], %s242
          %s244 = sand.u32 %s43, 1
          %s245 = smul.addr %s244, 8
          %s246 = scalar_lea.vmem [#allocation4], %s245
          %s247 = smul.u32 2, %s27
          %249 = vsyncadd %s243, 0
          %s250 = smul.addr %s26, 4
          %s251 = sadd.s32 %s247, %s250
          %s252 = smul.addr %s251, 4
          %s253 = scalar_lea.hbm %s0, %s252
          %s254 = sshll.u32 %s253, 4
          %s255 = int_to_ptr.hbm [resolvable:$true] %s254
          %s256 = sshll.u32 %s246, 4
          %s257 = int_to_ptr.vmem [resolvable:$true] %s256
          %262 = dma.hbm_to_vmem [thread:$0]  %s255, 128, %s257, %s243, 64, 64, 4
        $region36: #{tpu_custom_call.1} parent=31 // pred_fallthru
          _
        // Predicated region
        $region37: #{tpu_custom_call.1} parent=31 // pred_check
          %p263 = pneg %p81
        $region38: #{tpu_custom_call.1} parent=31 // pred_check_branch
          %265 = sbr.rel (%p263) target = $region40
        $region39: #{tpu_custom_call.1} parent=31 // pred_region
          %s266 = smul.u32 2, %s27
          %p267 = scmp.lt.s32.totalorder %s26, 1
          %s268 = scalar_select %p267, %s26, 1
          %p269 = scmp.lt.s32.totalorder %s266, 3
          %s270 = scalar_select %p269, %s266, 3
          %s271 = smul.addr %s268, 4
          %s272 = sadd.s32 %s270, %s271
          %s273 = smul.addr %s272, 8
          %s274 = scalar_lea.vmem %s1, %s273
          %s275 = smul.u32 2, %s27
        $region40: #{tpu_custom_call.1} parent=31 // pred_fallthru
          _
      $region32: #{tpu_custom_call.1} parent=5 // pred_fallthru
        _
      %p276 = scmp.le.s32.totalorder 1, %s19
      %p277 = scmp.lt.s32.totalorder %s19, 5
      %p278 = pnand %p276, %p277
      %p279 = pneg %p278
      // Predicated region
      $region41: #{tpu_custom_call.1} parent=5 // pred_check
        _
      $region42: #{tpu_custom_call.1} parent=5 // pred_check_branch
        %281 = sbr.rel (%p278) target = $region44
      $region43: #{tpu_custom_call.1} parent=5 // pred_region
        %s282 = ssub.s32 %s19, 1
        %s283 = sand.u32 %s46, 1
        %s284 = scalar_lea.sflag [#allocation5], %s283
        %s285 = sand.u32 %s46, 1
        %s286 = smul.addr %s285, 8
        %s287 = scalar_lea.vmem [#allocation4], %s286
        // Predicated region
        $region45: #{tpu_custom_call.1} parent=43 // pred_check
          %p288 = pneg %p59
        $region46: #{tpu_custom_call.1} parent=43 // pred_check_branch
          %290 = sbr.rel (%p288) target = $region48
        $region47: #{tpu_custom_call.1} parent=43 // pred_region
          %292 = dma.done %s284, 128
        $region48: #{tpu_custom_call.1} parent=43 // pred_fallthru
          _
        // Predicated region
        $region49: #{tpu_custom_call.1} parent=43 // pred_check
          %p293 = pneg %p150
        $region50: #{tpu_custom_call.1} parent=43 // pred_check_branch
          %295 = sbr.rel (%p293) target = $region52
        $region51: #{tpu_custom_call.1} parent=43 // pred_region
          %297 = dma.done [#allocation8], 2048
        $region52: #{tpu_custom_call.1} parent=43 // pred_fallthru
          _
        %s298 = sand.u32 %s46, 1
        %s299 = scalar_lea.sflag [#allocation5], %s298
        %s300 = sand.u32 %s46, 1
        %s301 = smul.addr %s300, 8
        %s302 = scalar_lea.vmem [#allocation4], %s301
        %p303 = pneg %p59
        %p304 = pneg %p56
        %s305 = smul.u32 2, %s29
        %p306 = scmp.lt.s32.totalorder %s28, 1
        %s307 = scalar_select %p306, %s28, 1
        %p308 = scmp.lt.s32.totalorder %s305, 3
        %s309 = scalar_select %p308, %s305, 3
        %s310 = smul.addr %s307, 4
        %s311 = sadd.s32 %s309, %s310
        %s312 = smul.addr %s311, 8
        %s313 = scalar_lea.vmem %s1, %s312
        %p314 = pneg %p87
        %p315 = pneg %p84
        %p316 = pneg %p108
        %p317 = pneg %p105
        %p318 = pneg %p129
        %p319 = pneg %p126
        %p320 = pneg %p150
        %p321 = pneg %p147
        %p322 = pneg %p171
        %p323 = pneg %p168
        %p324 = pneg %p197
        %p325 = pneg %p194
        %s326 = sand.u32 %s184, 1
        %s327 = scalar_lea.sflag [#allocation6], %s326
        %s328 = sand.u32 %s184, 1
        %s329 = scalar_lea.vmem [#allocation9], %s328
        %s330 = smul.u32 2, %s29
        %s331 = smul.u32 2, %s29
        %p332 = scmp.lt.s32.totalorder %s28, 1
        %s333 = scalar_select %p332, %s28, 1
        %p334 = scmp.lt.s32.totalorder %s331, 3
        %s335 = scalar_select %p334, %s331, 3
        %s336 = smul.addr %s333, 4
        %s337 = sadd.s32 %s335, %s336
        %s338 = smul.addr %s337, 8
        %s339 = scalar_lea.vmem %s1, %s338
        %s340 = smul.u32 2, %s29
        %p341 = scmp.eq.s32.totalorder %s29, 0
        // Predicated region
        $region53: #{tpu_custom_call.1} parent=43 // pred_check
          %p342 = pneg %p341
        $region54: #{tpu_custom_call.1} parent=43 // pred_check_branch
          %344 = sbr.rel (%p342) target = $region56
        $region55: #{tpu_custom_call.1} parent=43 // pred_region
          %345 = vst [vmem:[#allocation2] sm:$0x1] 0.0
          %vm346 = vcmask 0
          %347 = vst.msk [vmem:[#allocation3] sm:$0x1] %vm346, 0.0
        $region56: #{tpu_custom_call.1} parent=43 // pred_fallthru
          _
        %v348 = vld [vmem:[%s287] sm:$0xf]
        %v349 = vld [vmem:[%s287 + $0x4] sm:$0xf]
        %v350 = vld [vmem:[%s2] sm:$0xf]
        %v351 = vld [vmem:[%s2 + $0x4] sm:$0xf]
        %v352 = vld [vmem:[%s2 + $0x8] sm:$0xf]
        %v353 = vld [vmem:[%s2 + $0xc] sm:$0xf]
        %v354 = vld [vmem:[%s2 + $0x10] sm:$0xf]
        %v355 = vld [vmem:[%s2 + $0x14] sm:$0xf]
        %v356 = vld [vmem:[%s2 + $0x18] sm:$0xf]
        %v357 = vld [vmem:[%s2 + $0x1c] sm:$0xf]
        %v358 = vld [vmem:[%s2 + $0x20] sm:$0xf]
        %v359 = vld [vmem:[%s2 + $0x24] sm:$0xf]
        %v360 = vld [vmem:[%s2 + $0x28] sm:$0xf]
        %v361 = vld [vmem:[%s2 + $0x2c] sm:$0xf]
        %v362 = vld [vmem:[%s2 + $0x30] sm:$0xf]
        %v363 = vld [vmem:[%s2 + $0x34] sm:$0xf]
        %v364 = vld [vmem:[%s2 + $0x38] sm:$0xf]
        %v365 = vld [vmem:[%s2 + $0x3c] sm:$0xf]
        %v366 = vld [vmem:[%s3] sm:$0x1]
        %v368 = vperm.slane %v366, 0
        %v372 = vunpack.c.l.b16 %v348
        %v373 = vunpack.c.l.b16 %v349
        %v374 = vpack.c.b16 %v373, %v372
        %v392 = vunpack.c.l.b16 %v350
        %v393 = vunpack.c.l.b16 %v351
        %v394 = vunpack.c.l.b16 %v352
        %v395 = vunpack.c.l.b16 %v353
        %v396 = vunpack.c.l.b16 %v354
        %v397 = vunpack.c.l.b16 %v355
        %v398 = vunpack.c.l.b16 %v356
        %v399 = vunpack.c.l.b16 %v357
        %v400 = vunpack.c.l.b16 %v358
        %v401 = vunpack.c.l.b16 %v359
        %v402 = vunpack.c.l.b16 %v360
        %v403 = vunpack.c.l.b16 %v361
        %v404 = vunpack.c.l.b16 %v362
        %v405 = vunpack.c.l.b16 %v363
        %v406 = vunpack.c.l.b16 %v364
        %v407 = vunpack.c.l.b16 %v365
        %v408 = vpack.c.b16 %v393, %v392
        %v409 = vpack.c.b16 %v395, %v394
        %v410 = vpack.c.b16 %v397, %v396
        %v411 = vpack.c.b16 %v399, %v398
        %v412 = vpack.c.b16 %v401, %v400
        %v413 = vpack.c.b16 %v403, %v402
        %v414 = vpack.c.b16 %v405, %v404
        %v415 = vpack.c.b16 %v407, %v406
        %424 = vmatpush.bf16.msra.mxu0 %v415
        %425 = vmatpush.bf16.msra.mxu0 %v414
        %426 = vmatpush.bf16.msra.mxu0 %v413
        %427 = vmatpush.bf16.msra.mxu0 %v412
        %428 = vmatpush.bf16.msra.mxu0 %v411
        %429 = vmatpush.bf16.msra.mxu0 %v410
        %430 = vmatpush.bf16.msra.mxu0 %v409
        %431 = vmatpush.bf16.msra.mxu0 %v408
        %432 = vmatmul.bf16.gmra.mxu0 %v374
        %v433 = vpop.f32.mrf.mxu0
        %v434 = vadd.f32 %v368, %v433
        %v435 = vpop.f32.mrf.mxu0
        %v436 = vadd.f32 %v368, %v435
        %437 = vdwg.mxu0
        %v438 = vtanh.pop %v434
        %v439 = vtanh.pop %v436
        %v440 = vld [vmem:[%s339] sm:$0xff]
        %v441 = vld [vmem:[%s339 + $0x8] sm:$0xff]
        %v442 = vld [vmem:[#allocation2] sm:$0x1]
        %444 = vset.pattern.permute.xlu0 0
        %445 = vperm.xlu0 %444, %v440
        %v446 = vpop.permute.xlu0 %445
        %449 = vset.pattern.permute.xlu0 0
        %450 = vperm.xlu0 %449, %v441
        %v451 = vpop.permute.xlu0 %450
        %v453 = vmul.f32 %v438, %v446
        %v454 = vmul.f32 %v439, %v451
        %v455 = vadd.f32 %v453, %v454
        %v456 = vrot.slane %v455, 4
        %v457 = vadd.f32 %v455, %v456
        %v458 = vrot.slane %v457, 2
        %v459 = vadd.f32 %v457, %v458
        %v460 = vrot.slane %v459, 1
        %v461 = vadd.f32 %v459, %v460
        %v462 = vadd.f32 %v442, %v461
        %463 = vst [vmem:[#allocation2] sm:$0x1] %v462
        %v464 = vld [vmem:[#allocation3] sm:$0x1]
        %vm465 = vcmask 7168
        %v466 = vsel %vm465, %v440, 0.0
        %v467 = vsel %vm465, %v441, 0.0
        %v468 = vadd.f32 %v466, %v467
        %v469 = vrot.slane %v468, 4
        %v470 = vadd.f32 %v468, %v469
        %v471 = vrot.slane %v470, 2
        %v472 = vadd.f32 %v470, %v471
        %v473 = vrot.slane %v472, 1
        %v474 = vadd.f32 %v472, %v473
        %v475 = vadd.f32 %v464, %v474
        %vm476 = vcmask 0
        %477 = vst.msk [vmem:[#allocation3] sm:$0x1] %vm476, %v475
        %p478 = scmp.eq.s32.totalorder %s29, 1
        // Predicated region
        $region57: #{tpu_custom_call.1} parent=43 // pred_check
          %p479 = pneg %p478
        $region58: #{tpu_custom_call.1} parent=43 // pred_check_branch
          %481 = sbr.rel (%p479) target = $region60
        $region59: #{tpu_custom_call.1} parent=43 // pred_region
          %v482 = vld [vmem:[#allocation3] sm:$0x1]
          %v483 = vmax.f32 %v482, 1e-09
          %v484 = vld [vmem:[#allocation2] sm:$0x1]
          %v485 = vrcp.pop %v483
          %487 = vset.pattern.permute.xlu0 0
          %488 = vperm.xlu0 %487, %v485
          %v489 = vpop.permute.xlu0 %488
          %v491 = vperm.slane %v489, 0
          %v492 = vmul.f32 %v484, %v491
          %v493 = vld [vmem:[#allocation7] sm:$0xff]
          %v494 = vld [vmem:[#allocation7 + $0x8] sm:$0xff]
          %v495 = vld [vmem:[#allocation7 + $0x10] sm:$0xff]
          %v496 = vld [vmem:[#allocation7 + $0x18] sm:$0xff]
          %v497 = vld [vmem:[#allocation7 + $0x20] sm:$0xff]
          %v498 = vld [vmem:[#allocation7 + $0x28] sm:$0xff]
          %v499 = vld [vmem:[#allocation7 + $0x30] sm:$0xff]
          %v500 = vld [vmem:[#allocation7 + $0x38] sm:$0xff]
          %v501 = vld [vmem:[#allocation7 + $0x40] sm:$0xff]
          %v502 = vld [vmem:[#allocation7 + $0x48] sm:$0xff]
          %v503 = vld [vmem:[#allocation7 + $0x50] sm:$0xff]
          %v504 = vld [vmem:[#allocation7 + $0x58] sm:$0xff]
          %v505 = vld [vmem:[#allocation7 + $0x60] sm:$0xff]
          %v506 = vld [vmem:[#allocation7 + $0x68] sm:$0xff]
          %v507 = vld [vmem:[#allocation7 + $0x70] sm:$0xff]
          %v508 = vld [vmem:[#allocation7 + $0x78] sm:$0xff]
          %v509 = vld [vmem:[%s5] sm:$0x1]
          %510 = vmatpush.msra.mxu0 %v508
          %511 = vmatpush.msra.mxu0 %v507
          %512 = vmatpush.msra.mxu0 %v506
          %513 = vmatpush.msra.mxu0 %v505
          %514 = vmatpush.msra.mxu0 %v504
          %515 = vmatpush.msra.mxu0 %v503
          %516 = vmatpush.msra.mxu0 %v502
          %517 = vmatpush.msra.mxu0 %v501
          %518 = vmatpush.msra.mxu0 %v500
          %519 = vmatpush.msra.mxu0 %v499
          %520 = vmatpush.msra.mxu0 %v498
          %521 = vmatpush.msra.mxu0 %v497
          %522 = vmatpush.msra.mxu0 %v496
          %523 = vmatpush.msra.mxu0 %v495
          %524 = vmatpush.msra.mxu0 %v494
          %525 = vmatpush.msra.mxu0 %v493
          %526 = vmatmul.f32.gmra.mxu0 %v492
          %v527 = vpop.f32.mrf.mxu0
          %v528 = vadd.f32 %v509, %v527
          %529 = vdwg.mxu0
          %530 = vst [vmem:[%s329] sm:$0x1] %v528
        $region60: #{tpu_custom_call.1} parent=43 // pred_fallthru
          _
        %s531 = sand.u32 %s184, 1
        %s532 = scalar_lea.sflag [#allocation6], %s531
        %s533 = sand.u32 %s184, 1
        %s534 = scalar_lea.vmem [#allocation9], %s533
        // Predicated region
        $region61: #{tpu_custom_call.1} parent=43 // pred_check
          %p535 = pneg %p194
        $region62: #{tpu_custom_call.1} parent=43 // pred_check_branch
          %537 = sbr.rel (%p535) target = $region64
        $region63: #{tpu_custom_call.1} parent=43 // pred_region
          %539 = vsyncadd %s532, 0
          %s540 = scalar_lea.hbm %s6, %s28
          %s542 = sshll.u32 %s534, 4
          %s543 = int_to_ptr.vmem [resolvable:$true] %s542
          %s544 = sshll.u32 %s540, 4
          %s545 = int_to_ptr.hbm [resolvable:$true] %s544
          %547 = dma.vmem_to_hbm [thread:$0]  %s543, 16, %s545, %s532
        $region64: #{tpu_custom_call.1} parent=43 // pred_fallthru
          _
      $region44: #{tpu_custom_call.1} parent=5 // pred_fallthru
        _
      %p548 = scmp.le.s32.totalorder 2, %s19
      // Predicated region
      $region65: #{tpu_custom_call.1} parent=5 // pred_check
        %p549 = pneg %p548
      $region66: #{tpu_custom_call.1} parent=5 // pred_check_branch
        %551 = sbr.rel (%p549) target = $region68
      $region67: #{tpu_custom_call.1} parent=5 // pred_region
        %s552 = ssub.s32 %s19, 2
        // Predicated region
        $region69: #{tpu_custom_call.1} parent=67 // pred_check
          %p553 = pneg %p200
        $region70: #{tpu_custom_call.1} parent=67 // pred_check_branch
          %555 = sbr.rel (%p553) target = $region72
        $region71: #{tpu_custom_call.1} parent=67 // pred_region
          %s556 = sand.u32 %s185, 1
          %s557 = scalar_lea.sflag [#allocation6], %s556
          %s558 = sand.u32 %s185, 1
          %s559 = scalar_lea.vmem [#allocation9], %s558
          %561 = dma.done %s557, 16
        $region72: #{tpu_custom_call.1} parent=67 // pred_fallthru
          _
      $region68: #{tpu_custom_call.1} parent=5 // pred_fallthru
        _
    $region6: #{tpu_custom_call.1} parent=1 // loop_footer
      %s23 = sadd.s32 1, %s19
    $region7: #{tpu_custom_call.1} parent=1 // loop_footer_branch
      %18 = sbr.rel target = $region3
    $region8: #{tpu_custom_call.1} parent=1 // loop_exit
      _
    %562 = vsyncpa [#allocation5], 1
    %s563 = scalar_lea.sflag [#allocation5], 1
    %564 = vsyncpa %s563, 1
    %565 = vsyncpa [#allocation8], 1
    %566 = vsyncpa [#allocation6], 1
    %s567 = scalar_lea.sflag [#allocation6], 1
    %568 = vsyncpa %s567, 1

</llo_original>
